<compile_context>
chip_gen: v5e
topology: v5e:2x2
jax: 0.10.0
libtpu: 0.0.40
codegen_flags: <defaults>
</compile_context>

<pallas_src>
import functools

import jax
import jax.numpy as jnp
from jax.experimental import pallas as pl
from jax.experimental.pallas import tpu as pltpu


def _round_up(n: int, m: int) -> int:
    return ((n + m - 1) // m) * m


def _scaling_kernel(x_ref, scale_ref, y_ref, *, reverse: bool, eps: float):
    # (1, TD) raw log-scale slice -> positive scale, computed in f32.
    s = scale_ref[...].astype(jnp.float32)
    sc = jnp.exp(s) + eps
    if reverse:
        # Exact reciprocal (single vrcp on the otherwise-idle EUP slot)
        # instead of pow(-1.0), which can lower to an exp/log pair.
        factor = pl.reciprocal(sc, approx=False)
    else:
        factor = sc
    x = x_ref[...].astype(jnp.float32)       # (TB, TD)
    y_ref[...] = (x * factor).astype(y_ref.dtype)


def scaling_forward(x, scale, *, reverse: bool = False, eps: float = 1e-5,
                    block_b: int = 512, block_d: int = 1024):
    """Pallas implementation of Scaling.forward.

    Args:
      x: (B, D) input.
      scale: (1, D) log-scale parameter.
      reverse: inference mode (divide) vs sampling mode (multiply).
    Returns:
      (y, log_det_J) with y shaped like x and log_det_J a scalar float32.
    """
    B, D = x.shape
    assert scale.shape == (1, D)

    # Pad so output stores are lane-dense (last dim multiple of 128) and the
    # batch dim is sublane-aligned (multiple of 8). Zero padding is harmless:
    # padded x columns are zero and get sliced away afterwards.
    B_pad = _round_up(B, 8)
    D_pad = _round_up(D, 128)
    if (B_pad, D_pad) != (B, D):
        x_p = jnp.pad(x, ((0, B_pad - B), (0, D_pad - D)))
        scale_p = jnp.pad(scale, ((0, 0), (0, D_pad - D)))
    else:
        x_p, scale_p = x, scale

    tb = min(block_b, B_pad)          # multiple of 8
    td = min(block_d, D_pad)          # multiple of 128
    grid = (pl.cdiv(B_pad, tb), pl.cdiv(D_pad, td))

    kernel = functools.partial(_scaling_kernel, reverse=reverse, eps=eps)
    y_p = pl.pallas_call(
        kernel,
        out_shape=jax.ShapeDtypeStruct((B_pad, D_pad), x.dtype),
        grid=grid,
        in_specs=[
            pl.BlockSpec((tb, td), lambda i, j: (i, j)),   # x tile
            pl.BlockSpec((1, td), lambda i, j: (0, j)),    # scale row, batch-invariant
        ],
        out_specs=pl.BlockSpec((tb, td), lambda i, j: (i, j)),
        compiler_params=pltpu.CompilerParams(
            dimension_semantics=("parallel", "parallel"),
        ),
    )(x_p, scale_p)

    y = y_p[:B, :D]

    # log-determinant of the Jacobian: sum of raw log-scale params (+ eps),
    # exactly as in the PyTorch reference (depends only on the parameter,
    # so it lives in the wrapper instead of being recomputed per grid step).
    log_det_J = jnp.sum(scale.astype(jnp.float32)) + eps
    return y, log_det_J


def _reference(x, scale, *, reverse: bool = False, eps: float = 1e-5):
    sc = jnp.exp(scale) + eps
    log_det = jnp.sum(scale) + eps
    y = x / sc if reverse else x * sc
    return y, log_det


if __name__ == "__main__":
    key = jax.random.PRNGKey(0)
    kx, ks = jax.random.split(key)

    B, D = 2, 32
    x = jax.random.normal(kx, (B, D), dtype=jnp.float32)
    # nn.Parameter(torch.zeros((1, dim))) — use a small deterministic non-zero
    # init so the scaling is non-trivial for testing.
    scale = 0.1 * jax.random.normal(ks, (1, D), dtype=jnp.float32)

    ok = True
    for reverse in (False, True):
        y, logdet = scaling_forward(x, scale, reverse=reverse)
        y = jax.block_until_ready(y)
        logdet = jax.block_until_ready(logdet)

        y_ref, logdet_ref = _reference(x, scale, reverse=reverse)
        ok &= bool(jnp.allclose(y, y_ref, atol=1e-5, rtol=1e-5))
        ok &= bool(jnp.allclose(logdet, logdet_ref, atol=1e-6, rtol=1e-6))

    if ok:
        print("KERNEL_OK")
    else:
        print("KERNEL_MISMATCH")
</pallas_src>

<mosaic_0001>
module attributes {stable_mosaic.version = 11 : i64} {
  func.func @_scaling_kernel(%arg0: i32, %arg1: i32, %arg2: memref<8x128xf32, #tpu.memory_space<vmem>>, %arg3: memref<1x128xf32, #tpu.memory_space<vmem>>, %arg4: memref<8x128xf32, #tpu.memory_space<vmem>>) attributes {dimension_semantics = [#tpu.dimension_semantics<parallel>, #tpu.dimension_semantics<parallel>], iteration_bounds = array<i64: 1, 1>, scalar_prefetch = 0 : i64, scratch_operands = 0 : i64, tpu.core_type = #tpu.core_type<tc>, window_params = [{transform_indices = @transform_0, window_bounds = array<i64: 8, 128>}, {transform_indices = @transform_1, window_bounds = array<i64: 1, 128>}, {transform_indices = @transform_2, window_bounds = array<i64: 8, 128>}]} {
    %c0 = arith.constant 0 : index
    %c0_0 = arith.constant 0 : index
    %0 = vector.load %arg3[%c0, %c0_0] : memref<1x128xf32, #tpu.memory_space<vmem>>, vector<1x128xf32>
    %1 = math.exp %0 : vector<1x128xf32>
    %cst = arith.constant 9.99999974E-6 : f32
    %2 = vector.broadcast %cst : f32 to vector<1x128xf32>
    %3 = arith.addf %1, %2 : vector<1x128xf32>
    %c0_1 = arith.constant 0 : index
    %c0_2 = arith.constant 0 : index
    %4 = vector.load %arg2[%c0_1, %c0_2] : memref<8x128xf32, #tpu.memory_space<vmem>>, vector<8x128xf32>
    %5 = vector.broadcast %3 : vector<1x128xf32> to vector<8x128xf32>
    %6 = arith.mulf %4, %5 : vector<8x128xf32>
    %c0_3 = arith.constant 0 : index
    %c0_4 = arith.constant 0 : index
    %7 = vector.load %arg4[%c0_3, %c0_4] : memref<8x128xf32, #tpu.memory_space<vmem>>, vector<8x128xf32>
    tpu.vector_store %arg4[%c0_3, %c0_4], %6 {strides = array<i32>} : memref<8x128xf32, #tpu.memory_space<vmem>>, vector<8x128xf32>,
    return
  }
  func.func @transform_0(%arg0: i32, %arg1: i32) -> (i32, i32) {
    %c0_i32 = arith.constant 0 : i32
    return %arg0, %arg1 : i32, i32
  }
  func.func @transform_1(%arg0: i32, %arg1: i32) -> (i32, i32) {
    %c0_i32 = arith.constant 0 : i32
    %c0_i32_0 = arith.constant 0 : i32
    return %c0_i32, %arg1 : i32, i32
  }
  func.func @transform_2(%arg0: i32, %arg1: i32) -> (i32, i32) {
    %c0_i32 = arith.constant 0 : i32
    return %arg0, %arg1 : i32, i32
  }
}

</mosaic_0001>

<llo_original>
// kernel: tpu_custom_call.1
$region0: #{tpu_custom_call.1}
  #allocation0 [shape = 'u32[]', space=smem, size = 0x4, offset = 0x4, fixed_abs, tag = 'smem constant byte address 0x4 - core index']
  #allocation1 [shape = 'u32[72,128]{1,0:T(1,128)}', space=vmem, size = 0x9000, scoped, tag = 'internal scratch']
  %s0 = inlined_call_operand.hbm [shape: f32[8,128], index: 0, kind: input, shape index: {}]
  %s1 = inlined_call_operand.hbm [shape: f32[1,128], index: 1, kind: input, shape index: {}]
  %s2 = inlined_call_operand.hbm [shape: f32[8,128], index: 2, kind: output, shape index: {}]
  %s3 = sld [smem:[#allocation0]]
  $region26: #{tpu_custom_call.1} parent=0
    _
  %s5 = ssub.s32 1, %s3
  %s6 = scalar_select 0, %s5, %s3
  $region1: #{tpu_custom_call.1} parent=0
    #allocation2 [shape = 'u8[4096]{0}', space=vmem, size = 0x1000, scoped, tag = 'input window, operand 0, single buffered']
    #allocation3 [shape = 's32[1]{0}', space=sflag, size = 0x4, scoped, tag = 'scoped memory for tpu_custom_call.1']
    #allocation4 [shape = 's32[1]{0}', space=sflag, size = 0x4, scoped, tag = 'scoped memory for tpu_custom_call.1']
    #allocation5 [shape = 'u8[512]{0}', space=vmem, size = 0x400, scoped, tag = 'input window, operand 1, single buffered']
    #allocation6 [shape = 's32[1]{0}', space=sflag, size = 0x4, scoped, tag = 'scoped memory for tpu_custom_call.1']
    #allocation7 [shape = 'u8[4096]{0}', space=vmem, size = 0x1000, scoped, tag = 'output window, operand 0, single buffered']
    %7 = vsyncpa [#allocation3], 0
    %8 = vsyncpa [#allocation6], 0
    %9 = vsyncpa [#allocation4], 0
    // Predicated region
    $region2: #{tpu_custom_call.1} parent=1 // pred_check
      _
    $region3: #{tpu_custom_call.1} parent=1 // pred_check_branch
      %11 = sbr.rel (0) target = $region5
    $region4: #{tpu_custom_call.1} parent=1 // pred_region
      %13 = vsyncadd [#allocation3], 0
      %s15 = sshll.u32 %s0, 4
      %s16 = int_to_ptr.hbm [resolvable:$true] %s15
      %s17 = sshll.u32 [#allocation2], 4
      %s18 = int_to_ptr.vmem [resolvable:$true] %s17
      %20 = dma.hbm_to_vmem [thread:$0]  %s16, 128, %s18, [#allocation3]
    $region5: #{tpu_custom_call.1} parent=1 // pred_fallthru
      _
    // Predicated region
    $region6: #{tpu_custom_call.1} parent=1 // pred_check
      _
    $region7: #{tpu_custom_call.1} parent=1 // pred_check_branch
      %22 = sbr.rel (0) target = $region9
    $region8: #{tpu_custom_call.1} parent=1 // pred_region
      %24 = vsyncadd [#allocation6], 0
      %s26 = sshll.u32 %s1, 4
      %s27 = int_to_ptr.hbm [resolvable:$true] %s26
      %s28 = sshll.u32 [#allocation5], 4
      %s29 = int_to_ptr.vmem [resolvable:$true] %s28
      %31 = dma.hbm_to_vmem [thread:$0]  %s27, 16, %s29, [#allocation6]
    $region9: #{tpu_custom_call.1} parent=1 // pred_fallthru
      _
    // Predicated region
    $region10: #{tpu_custom_call.1} parent=1 // pred_check
      _
    $region11: #{tpu_custom_call.1} parent=1 // pred_check_branch
      %33 = sbr.rel (0) target = $region13
    $region12: #{tpu_custom_call.1} parent=1 // pred_region
      %35 = dma.done [#allocation3], 128
    $region13: #{tpu_custom_call.1} parent=1 // pred_fallthru
      _
    // Predicated region
    $region14: #{tpu_custom_call.1} parent=1 // pred_check
      _
    $region15: #{tpu_custom_call.1} parent=1 // pred_check_branch
      %37 = sbr.rel (0) target = $region17
    $region16: #{tpu_custom_call.1} parent=1 // pred_region
      %39 = dma.done [#allocation6], 16
    $region17: #{tpu_custom_call.1} parent=1 // pred_fallthru
      _
    %v40 = vld [vmem:[#allocation5] sm:$0x1]
    %v41 = vmul.f32 %v40, 1.442695
    %v42 = vpow.pop %v41
    %v43 = vadd.f32 %v42, 1e-05
    %v44 = vld [vmem:[#allocation2] sm:$0xff]
    %v46 = vperm.slane %v43, 0
    %v48 = vmul.f32 %v44, %v46
    %49 = vst [vmem:[#allocation7] sm:$0xff] %v48
    // Predicated region
    $region18: #{tpu_custom_call.1} parent=1 // pred_check
      _
    $region19: #{tpu_custom_call.1} parent=1 // pred_check_branch
      %51 = sbr.rel (0) target = $region21
    $region20: #{tpu_custom_call.1} parent=1 // pred_region
      %53 = vsyncadd [#allocation4], 0
      %s55 = sshll.u32 [#allocation7], 4
      %s56 = int_to_ptr.vmem [resolvable:$true] %s55
      %s57 = sshll.u32 %s2, 4
      %s58 = int_to_ptr.hbm [resolvable:$true] %s57
      %60 = dma.vmem_to_hbm [thread:$0]  %s56, 128, %s58, [#allocation4]
    $region21: #{tpu_custom_call.1} parent=1 // pred_fallthru
      _
    // Predicated region
    $region22: #{tpu_custom_call.1} parent=1 // pred_check
      _
    $region23: #{tpu_custom_call.1} parent=1 // pred_check_branch
      %62 = sbr.rel (0) target = $region25
    $region24: #{tpu_custom_call.1} parent=1 // pred_region
      %64 = dma.done [#allocation4], 128
    $region25: #{tpu_custom_call.1} parent=1 // pred_fallthru
      _
    %65 = vsyncpa [#allocation3], 1
    %66 = vsyncpa [#allocation6], 1
    %67 = vsyncpa [#allocation4], 1

</llo_original>
